<compile_context>
chip_gen: v7x
topology: tpu7x:2x2x1
jax: 0.10.0
libtpu: 0.0.40
codegen_flags: <defaults>
</compile_context>

<pallas_src>
import functools

import jax
import jax.numpy as jnp
from jax import lax
from jax.experimental import pallas as pl
from jax.experimental.pallas import tpu as pltpu


def _round_up(a: int, b: int) -> int:
    return ((a + b - 1) // b) * b


def _chip_config():
    """Returns (bf16_valu_ok, vmem_limit_bytes, vmem_budget_bytes), generation-aware."""
    try:
        kind = jax.devices()[0].device_kind.lower()
    except Exception:  # pragma: no cover - defensive
        kind = ""
    try:
        vmem_cap = int(pltpu.get_tpu_info().vmem_capacity_bytes)
    except Exception:  # pragma: no cover - defensive
        vmem_cap = 64 * 1024 * 1024  # assume the smallest (v7x-sized) VMEM

    # v6e / v7x have packed-bf16 VALUs; v5e (and older) do not -> f32 elementwise there.
    bf16_valu = ("v6" in kind) or ("v7" in kind)

    if vmem_cap >= 96 * 1024 * 1024:            # 128 MiB parts (v5e / v6e)
        vmem_limit = 100 * 1024 * 1024
    else:                                        # 64 MiB per TC (v7x) or unknown
        vmem_limit = max(min(vmem_cap - 8 * 1024 * 1024, 56 * 1024 * 1024),
                         32 * 1024 * 1024)
    vmem_budget = vmem_limit - 8 * 1024 * 1024   # headroom for Mosaic internal scratch
    return bf16_valu, vmem_limit, vmem_budget


def transition_kernel(x_ref, scale_ref, shift_ref, w_ref, o_ref, *, compute_dtype):
    """Fused BN + ReLU + 2x2 avg-pool + 1x1 conv for one tile of output pixels.

    x_ref:     (4, TM, Cin) bf16  space-to-depth activations (slot, pixel, channel)
    scale_ref: (1, Cin)     f32   folded BN scale * 0.25  (0.25 * gamma / sqrt(var + eps))
    shift_ref: (1, Cin)     f32   folded BN shift * 0.25  (0.25 * (beta - mean * scale))
    w_ref:     (Cin, Cp)    bf16  1x1 conv weight (transposed, zero-padded to Cp lanes)
    o_ref:     (TM, Cp)           output pixels
    """
    scale = scale_ref[...].astype(compute_dtype)
    shift = shift_ref[...].astype(compute_dtype)
    zero = jnp.zeros((), compute_dtype)

    def bn_relu(slot):
        xs = x_ref[slot].astype(compute_dtype)               # (TM, Cin)
        return jnp.maximum(xs * scale + shift, zero)          # BN affine + ReLU (VPU)

    # 2x2 average pool on the VPU; the 0.25 factor is pre-folded into scale/shift.
    pooled = (bn_relu(0) + bn_relu(1)) + (bn_relu(2) + bn_relu(3))

    # bf16 matmul on the MXU, f32 accumulation.
    o_ref[...] = jnp.dot(
        pooled.astype(jnp.bfloat16), w_ref[...],
        preferred_element_type=jnp.float32,
    ).astype(o_ref.dtype)


def transition_layer(x, gamma, beta, conv_w, eps=1e-5, tm=None, out_dtype=None,
                     single_buffer_consts=True):
    """x: (N, Cin, H, W) NCHW.  conv_w: (Cout, Cin).  Returns (N, Cout, H/2, W/2)."""
    N, C, H, W = x.shape
    Cout = conv_w.shape[0]
    assert H % 2 == 0 and W % 2 == 0
    Ho, Wo = H // 2, W // 2
    M = N * Ho * Wo
    out_dtype = x.dtype if out_dtype is None else out_dtype

    bf16_valu, vmem_limit, vmem_budget = _chip_config()
    compute_dtype = jnp.bfloat16 if bf16_valu else jnp.float32

    # --- BN train-mode batch statistics (biased variance), one fused reduction pass ---
    xf = x.astype(jnp.float32)
    mean = jnp.mean(xf, axis=(0, 2, 3))
    var = jnp.maximum(jnp.mean(xf * xf, axis=(0, 2, 3)) - mean * mean, 0.0)
    scale_v = gamma.astype(jnp.float32) * lax.rsqrt(var + eps)
    shift_v = beta.astype(jnp.float32) - mean * scale_v
    # Fold the 2x2 average-pool factor into the BN constants (relu(0.25*z) == 0.25*relu(z)).
    scale = (0.25 * scale_v)[None, :]                          # (1, Cin)
    shift = (0.25 * shift_v)[None, :]                          # (1, Cin)

    # --- single space-to-depth transpose, stored bf16: NCHW -> (4, N*Ho*Wo, Cin) ---
    # dims after reshape: (n, c, ho, r, wo, s); transpose to (r, s, n, ho, wo, c)
    x_s2d = (
        xf.reshape(N, C, Ho, 2, Wo, 2)
        .transpose(3, 5, 0, 2, 4, 1)
        .reshape(4, M, C)
        .astype(jnp.bfloat16)
    )

    # --- lane-dense output: pad Cout to a multiple of 128; pre-cast weight to bf16 ---
    Cp = _round_up(max(Cout, 128), 128)
    w = jnp.zeros((C, Cp), jnp.bfloat16).at[:, :Cout].set(conv_w.T.astype(jnp.bfloat16))

    # --- pick the largest VMEM-safe M tile (generation-aware) ---
    if tm is None:
        tm = 2048 if (C <= 512 and vmem_budget >= 80 * 1024 * 1024) else 1024
    out_isz = jnp.dtype(out_dtype).itemsize
    cd_isz = jnp.dtype(compute_dtype).itemsize
    if M <= tm:
        tm = M                                                 # single block == full dim
    else:
        wbuf = 1 if single_buffer_consts else 2

        def vmem_bytes(t):
            return (2 * t * 4 * C * 2          # double-buffered bf16 x tile
                    + 2 * t * Cp * out_isz     # double-buffered output tile
                    + wbuf * C * Cp * 2        # weight tile (bf16)
                    + 2 * 2 * C * 4            # scale/shift
                    + t * C * (cd_isz + 2 + 4))  # pooled + bf16 copy + bn_relu temporaries

        while tm > 8 and vmem_bytes(tm) > vmem_budget:
            tm //= 2

    grid = (pl.cdiv(M, tm),)

    # Constant-index blocks need no double buffering; reclaim their second VMEM buffer.
    const_kw = dict(pipeline_mode=pl.Buffered(1)) if single_buffer_consts else {}
    in_specs = [
        pl.BlockSpec((4, tm, C), lambda i: (0, i, 0)),
        pl.BlockSpec((1, C), lambda i: (0, 0), **const_kw),
        pl.BlockSpec((1, C), lambda i: (0, 0), **const_kw),
        pl.BlockSpec((C, Cp), lambda i: (0, 0), **const_kw),
    ]

    out = pl.pallas_call(
        functools.partial(transition_kernel, compute_dtype=compute_dtype),
        out_shape=jax.ShapeDtypeStruct((M, Cp), out_dtype),
        grid_spec=pltpu.PrefetchScalarGridSpec(
            num_scalar_prefetch=0,
            grid=grid,
            in_specs=in_specs,
            out_specs=pl.BlockSpec((tm, Cp), lambda i: (i, 0)),
        ),
        compiler_params=pltpu.CompilerParams(
            dimension_semantics=("parallel",),       # megacore sharding of the M axis
            vmem_limit_bytes=vmem_limit,
        ),
    )(x_s2d, scale, shift, w)

    if Cp != Cout:                                   # skip the copy when lane-aligned
        out = out[:, :Cout]
    out = out.reshape(N, Ho, Wo, Cout).astype(out_dtype)
    return jnp.transpose(out, (0, 3, 1, 2))


def reference_forward(x, gamma, beta, conv_w, eps=1e-5):
    """Plain-JAX reference matching PyTorch train-mode forward."""
    mean = x.mean(axis=(0, 2, 3), keepdims=True)
    var = ((x - mean) ** 2).mean(axis=(0, 2, 3), keepdims=True)
    z = (x - mean) / jnp.sqrt(var + eps)
    z = z * gamma[None, :, None, None] + beta[None, :, None, None]
    z = jnp.maximum(z, 0.0)
    y = jnp.einsum("nchw,oc->nohw", z, conv_w)
    N, Co, H, W = y.shape
    return y.reshape(N, Co, H // 2, 2, W // 2, 2).mean(axis=(3, 5))


if __name__ == "__main__":
    key = jax.random.PRNGKey(0)
    k_x, k_g, k_b, k_w = jax.random.split(key, 4)

    N, Cin, Cout, H, W = 2, 16, 8, 16, 16
    x = jax.random.normal(k_x, (N, Cin, H, W), dtype=jnp.float32)
    gamma = 1.0 + 0.1 * jax.random.normal(k_g, (Cin,), dtype=jnp.float32)
    beta = 0.1 * jax.random.normal(k_b, (Cin,), dtype=jnp.float32)
    conv_w = jax.random.normal(k_w, (Cout, Cin), dtype=jnp.float32) * (1.0 / Cin ** 0.5)

    def run(single_buffer_consts):
        fwd = jax.jit(functools.partial(
            transition_layer, single_buffer_consts=single_buffer_consts))
        return jax.block_until_ready(fwd(x, gamma, beta, conv_w))

    try:
        y = run(True)
    except Exception:
        # Graceful degradation: some JAX versions reject pl.Buffered(1) on constant-index
        # blocks; drop the single-buffering hint (correctness/other opts unaffected).
        y = run(False)

    y_ref = reference_forward(x, gamma, beta, conv_w)
    assert y.shape == (N, Cout, H // 2, W // 2), y.shape
    # bf16 activation storage + bf16 MXU (and bf16 VALU on v6e/v7x) -> loosened tolerance.
    max_err = float(jnp.abs(y - y_ref).max())
    assert jnp.allclose(y, y_ref, atol=5e-2, rtol=5e-2), max_err

    print("KERNEL_OK")
</pallas_src>

<mosaic_0001>
module attributes {stable_mosaic.version = 11 : i64} {
  func.func @transition_kernel(%arg0: i32, %arg1: memref<4x128x16xbf16, #tpu.memory_space<vmem>>, %arg2: memref<1x16xf32, #tpu.memory_space<vmem>>, %arg3: memref<1x16xf32, #tpu.memory_space<vmem>>, %arg4: memref<16x128xbf16, #tpu.memory_space<vmem>>, %arg5: memref<128x128xf32, #tpu.memory_space<vmem>>) attributes {dimension_semantics = [#tpu.dimension_semantics<parallel>], iteration_bounds = array<i64: 1>, scalar_prefetch = 0 : i64, scratch_operands = 0 : i64, tpu.core_type = #tpu.core_type<tc>, window_params = [{transform_indices = @transform_0, window_bounds = array<i64: 4, 128, 16>}, {pipeline_mode = #tpu.pipeline_mode<synchronous>, transform_indices = @transform_1, window_bounds = array<i64: 1, 16>}, {pipeline_mode = #tpu.pipeline_mode<synchronous>, transform_indices = @transform_2, window_bounds = array<i64: 1, 16>}, {pipeline_mode = #tpu.pipeline_mode<synchronous>, transform_indices = @transform_3, window_bounds = array<i64: 16, 128>}, {transform_indices = @transform_4, window_bounds = array<i64: 128, 128>}]} {
    %c0 = arith.constant 0 : index
    %c0_0 = arith.constant 0 : index
    %0 = vector.load %arg2[%c0, %c0_0] : memref<1x16xf32, #tpu.memory_space<vmem>>, vector<1x16xf32>
    %c0_1 = arith.constant 0 : index
    %c0_2 = arith.constant 0 : index
    %1 = vector.load %arg3[%c0_1, %c0_2] : memref<1x16xf32, #tpu.memory_space<vmem>>, vector<1x16xf32>
    %c0_3 = arith.constant 0 : index
    %c0_4 = arith.constant 0 : index
    %c0_5 = arith.constant 0 : index
    %2 = vector.load %arg1[%c0_3, %c0_4, %c0_5] : memref<4x128x16xbf16, #tpu.memory_space<vmem>>, vector<1x128x16xbf16>
    %3 = vector.shape_cast %2 : vector<1x128x16xbf16> to vector<128x16xbf16>
    %4 = arith.extf %3 : vector<128x16xbf16> to vector<128x16xf32>
    %5 = vector.broadcast %0 : vector<1x16xf32> to vector<128x16xf32>
    %6 = arith.mulf %4, %5 : vector<128x16xf32>
    %7 = vector.broadcast %1 : vector<1x16xf32> to vector<128x16xf32>
    %8 = arith.addf %6, %7 : vector<128x16xf32>
    %cst = arith.constant 0.000000e+00 : f32
    %9 = vector.broadcast %cst : f32 to vector<128x16xf32>
    %10 = arith.maximumf %8, %9 : vector<128x16xf32>
    %c1 = arith.constant 1 : index
    %c0_6 = arith.constant 0 : index
    %c0_7 = arith.constant 0 : index
    %11 = vector.load %arg1[%c1, %c0_6, %c0_7] : memref<4x128x16xbf16, #tpu.memory_space<vmem>>, vector<1x128x16xbf16>
    %12 = vector.shape_cast %11 : vector<1x128x16xbf16> to vector<128x16xbf16>
    %13 = arith.extf %12 : vector<128x16xbf16> to vector<128x16xf32>
    %14 = vector.broadcast %0 : vector<1x16xf32> to vector<128x16xf32>
    %15 = arith.mulf %13, %14 : vector<128x16xf32>
    %16 = vector.broadcast %1 : vector<1x16xf32> to vector<128x16xf32>
    %17 = arith.addf %15, %16 : vector<128x16xf32>
    %cst_8 = arith.constant 0.000000e+00 : f32
    %18 = vector.broadcast %cst_8 : f32 to vector<128x16xf32>
    %19 = arith.maximumf %17, %18 : vector<128x16xf32>
    %20 = arith.addf %10, %19 : vector<128x16xf32>
    %c2 = arith.constant 2 : index
    %c0_9 = arith.constant 0 : index
    %c0_10 = arith.constant 0 : index
    %21 = vector.load %arg1[%c2, %c0_9, %c0_10] : memref<4x128x16xbf16, #tpu.memory_space<vmem>>, vector<1x128x16xbf16>
    %22 = vector.shape_cast %21 : vector<1x128x16xbf16> to vector<128x16xbf16>
    %23 = arith.extf %22 : vector<128x16xbf16> to vector<128x16xf32>
    %24 = vector.broadcast %0 : vector<1x16xf32> to vector<128x16xf32>
    %25 = arith.mulf %23, %24 : vector<128x16xf32>
    %26 = vector.broadcast %1 : vector<1x16xf32> to vector<128x16xf32>
    %27 = arith.addf %25, %26 : vector<128x16xf32>
    %cst_11 = arith.constant 0.000000e+00 : f32
    %28 = vector.broadcast %cst_11 : f32 to vector<128x16xf32>
    %29 = arith.maximumf %27, %28 : vector<128x16xf32>
    %c3 = arith.constant 3 : index
    %c0_12 = arith.constant 0 : index
    %c0_13 = arith.constant 0 : index
    %30 = vector.load %arg1[%c3, %c0_12, %c0_13] : memref<4x128x16xbf16, #tpu.memory_space<vmem>>, vector<1x128x16xbf16>
    %31 = vector.shape_cast %30 : vector<1x128x16xbf16> to vector<128x16xbf16>
    %32 = arith.extf %31 : vector<128x16xbf16> to vector<128x16xf32>
    %33 = vector.broadcast %0 : vector<1x16xf32> to vector<128x16xf32>
    %34 = arith.mulf %32, %33 : vector<128x16xf32>
    %35 = vector.broadcast %1 : vector<1x16xf32> to vector<128x16xf32>
    %36 = arith.addf %34, %35 : vector<128x16xf32>
    %cst_14 = arith.constant 0.000000e+00 : f32
    %37 = vector.broadcast %cst_14 : f32 to vector<128x16xf32>
    %38 = arith.maximumf %36, %37 : vector<128x16xf32>
    %39 = arith.addf %29, %38 : vector<128x16xf32>
    %40 = arith.addf %20, %39 : vector<128x16xf32>
    %41 = arith.truncf %40 : vector<128x16xf32> to vector<128x16xbf16>
    %c0_15 = arith.constant 0 : index
    %c0_16 = arith.constant 0 : index
    %42 = vector.load %arg4[%c0_15, %c0_16] : memref<16x128xbf16, #tpu.memory_space<vmem>>, vector<16x128xbf16>
    %cst_17 = arith.constant dense<0.000000e+00> : vector<128x128xf32>
    %43 = tpu.matmul %41, %42, %cst_17 {dimension_numbers = #tpu.dot_dimension_numbers<[1], [0], [0], [1], [0, 0, 1, 1], [], []>} : vector<128x16xbf16>, vector<16x128xbf16>, vector<128x128xf32> -> vector<128x128xf32>
    %c0_18 = arith.constant 0 : index
    %c0_19 = arith.constant 0 : index
    %44 = vector.load %arg5[%c0_18, %c0_19] : memref<128x128xf32, #tpu.memory_space<vmem>>, vector<128x128xf32>
    tpu.vector_store %arg5[%c0_18, %c0_19], %43 {strides = array<i32>} : memref<128x128xf32, #tpu.memory_space<vmem>>, vector<128x128xf32>,
    return
  }
  func.func @transform_0(%arg0: i32) -> (i32, i32, i32) {
    %c0_i32 = arith.constant 0 : i32
    %c0_i32_0 = arith.constant 0 : i32
    %c0_i32_1 = arith.constant 0 : i32
    return %c0_i32, %arg0, %c0_i32_0 : i32, i32, i32
  }
  func.func @transform_1(%arg0: i32) -> (i32, i32) {
    %c0_i32 = arith.constant 0 : i32
    %c0_i32_0 = arith.constant 0 : i32
    %c0_i32_1 = arith.constant 0 : i32
    return %c0_i32, %c0_i32_0 : i32, i32
  }
  func.func @transform_2(%arg0: i32) -> (i32, i32) {
    %c0_i32 = arith.constant 0 : i32
    %c0_i32_0 = arith.constant 0 : i32
    %c0_i32_1 = arith.constant 0 : i32
    return %c0_i32, %c0_i32_0 : i32, i32
  }
  func.func @transform_3(%arg0: i32) -> (i32, i32) {
    %c0_i32 = arith.constant 0 : i32
    %c0_i32_0 = arith.constant 0 : i32
    %c0_i32_1 = arith.constant 0 : i32
    return %c0_i32, %c0_i32_0 : i32, i32
  }
  func.func @transform_4(%arg0: i32) -> (i32, i32) {
    %c0_i32 = arith.constant 0 : i32
    %c0_i32_0 = arith.constant 0 : i32
    return %arg0, %c0_i32 : i32, i32
  }
}

module attributes {stable_mosaic.version = 11 : i64} {
  func.func @transition_kernel(%arg0: i32, %arg1: memref<4x128x16xbf16, #tpu.memory_space<vmem>>, %arg2: memref<1x16xf32, #tpu.memory_space<vmem>>, %arg3: memref<1x16xf32, #tpu.memory_space<vmem>>, %arg4: memref<16x128xbf16, #tpu.memory_space<vmem>>, %arg5: memref<128x128xf32, #tpu.memory_space<vmem>>) attributes {dimension_semantics = [#tpu.dimension_semantics<parallel>], iteration_bounds = array<i64: 1>, scalar_prefetch = 0 : i64, scratch_operands = 0 : i64, tpu.core_type = #tpu.core_type<tc>, window_params = [{transform_indices = @transform_0, window_bounds = array<i64: 4, 128, 16>}, {pipeline_mode = #tpu.pipeline_mode<synchronous>, transform_indices = @transform_1, window_bounds = array<i64: 1, 16>}, {pipeline_mode = #tpu.pipeline_mode<synchronous>, transform_indices = @transform_2, window_bounds = array<i64: 1, 16>}, {pipeline_mode = #tpu.pipeline_mode<synchronous>, transform_indices = @transform_3, window_bounds = array<i64: 16, 128>}, {transform_indices = @transform_4, window_bounds = array<i64: 128, 128>}]} {
    %c0 = arith.constant 0 : index
    %c0_0 = arith.constant 0 : index
    %0 = vector.load %arg2[%c0, %c0_0] : memref<1x16xf32, #tpu.memory_space<vmem>>, vector<1x16xf32>
    %c0_1 = arith.constant 0 : index
    %c0_2 = arith.constant 0 : index
    %1 = vector.load %arg3[%c0_1, %c0_2] : memref<1x16xf32, #tpu.memory_space<vmem>>, vector<1x16xf32>
    %c0_3 = arith.constant 0 : index
    %c0_4 = arith.constant 0 : index
    %c0_5 = arith.constant 0 : index
    %2 = vector.load %arg1[%c0_3, %c0_4, %c0_5] : memref<4x128x16xbf16, #tpu.memory_space<vmem>>, vector<1x128x16xbf16>
    %3 = vector.shape_cast %2 : vector<1x128x16xbf16> to vector<128x16xbf16>
    %4 = arith.extf %3 : vector<128x16xbf16> to vector<128x16xf32>
    %5 = vector.broadcast %0 : vector<1x16xf32> to vector<128x16xf32>
    %6 = arith.mulf %4, %5 : vector<128x16xf32>
    %7 = vector.broadcast %1 : vector<1x16xf32> to vector<128x16xf32>
    %8 = arith.addf %6, %7 : vector<128x16xf32>
    %cst = arith.constant 0.000000e+00 : f32
    %9 = vector.broadcast %cst : f32 to vector<128x16xf32>
    %10 = arith.maximumf %8, %9 : vector<128x16xf32>
    %c1 = arith.constant 1 : index
    %c0_6 = arith.constant 0 : index
    %c0_7 = arith.constant 0 : index
    %11 = vector.load %arg1[%c1, %c0_6, %c0_7] : memref<4x128x16xbf16, #tpu.memory_space<vmem>>, vector<1x128x16xbf16>
    %12 = vector.shape_cast %11 : vector<1x128x16xbf16> to vector<128x16xbf16>
    %13 = arith.extf %12 : vector<128x16xbf16> to vector<128x16xf32>
    %14 = vector.broadcast %0 : vector<1x16xf32> to vector<128x16xf32>
    %15 = arith.mulf %13, %14 : vector<128x16xf32>
    %16 = vector.broadcast %1 : vector<1x16xf32> to vector<128x16xf32>
    %17 = arith.addf %15, %16 : vector<128x16xf32>
    %cst_8 = arith.constant 0.000000e+00 : f32
    %18 = vector.broadcast %cst_8 : f32 to vector<128x16xf32>
    %19 = arith.maximumf %17, %18 : vector<128x16xf32>
    %20 = arith.addf %10, %19 : vector<128x16xf32>
    %c2 = arith.constant 2 : index
    %c0_9 = arith.constant 0 : index
    %c0_10 = arith.constant 0 : index
    %21 = vector.load %arg1[%c2, %c0_9, %c0_10] : memref<4x128x16xbf16, #tpu.memory_space<vmem>>, vector<1x128x16xbf16>
    %22 = vector.shape_cast %21 : vector<1x128x16xbf16> to vector<128x16xbf16>
    %23 = arith.extf %22 : vector<128x16xbf16> to vector<128x16xf32>
    %24 = vector.broadcast %0 : vector<1x16xf32> to vector<128x16xf32>
    %25 = arith.mulf %23, %24 : vector<128x16xf32>
    %26 = vector.broadcast %1 : vector<1x16xf32> to vector<128x16xf32>
    %27 = arith.addf %25, %26 : vector<128x16xf32>
    %cst_11 = arith.constant 0.000000e+00 : f32
    %28 = vector.broadcast %cst_11 : f32 to vector<128x16xf32>
    %29 = arith.maximumf %27, %28 : vector<128x16xf32>
    %c3 = arith.constant 3 : index
    %c0_12 = arith.constant 0 : index
    %c0_13 = arith.constant 0 : index
    %30 = vector.load %arg1[%c3, %c0_12, %c0_13] : memref<4x128x16xbf16, #tpu.memory_space<vmem>>, vector<1x128x16xbf16>
    %31 = vector.shape_cast %30 : vector<1x128x16xbf16> to vector<128x16xbf16>
    %32 = arith.extf %31 : vector<128x16xbf16> to vector<128x16xf32>
    %33 = vector.broadcast %0 : vector<1x16xf32> to vector<128x16xf32>
    %34 = arith.mulf %32, %33 : vector<128x16xf32>
    %35 = vector.broadcast %1 : vector<1x16xf32> to vector<128x16xf32>
    %36 = arith.addf %34, %35 : vector<128x16xf32>
    %cst_14 = arith.constant 0.000000e+00 : f32
    %37 = vector.broadcast %cst_14 : f32 to vector<128x16xf32>
    %38 = arith.maximumf %36, %37 : vector<128x16xf32>
    %39 = arith.addf %29, %38 : vector<128x16xf32>
    %40 = arith.addf %20, %39 : vector<128x16xf32>
    %41 = arith.truncf %40 : vector<128x16xf32> to vector<128x16xbf16>
    %c0_15 = arith.constant 0 : index
    %c0_16 = arith.constant 0 : index
    %42 = vector.load %arg4[%c0_15, %c0_16] : memref<16x128xbf16, #tpu.memory_space<vmem>>, vector<16x128xbf16>
    %cst_17 = arith.constant dense<0.000000e+00> : vector<128x128xf32>
    %43 = tpu.matmul %41, %42, %cst_17 {dimension_numbers = #tpu.dot_dimension_numbers<[1], [0], [0], [1], [0, 0, 1, 1], [], []>} : vector<128x16xbf16>, vector<16x128xbf16>, vector<128x128xf32> -> vector<128x128xf32>
    %c0_18 = arith.constant 0 : index
    %c0_19 = arith.constant 0 : index
    %44 = vector.load %arg5[%c0_18, %c0_19] : memref<128x128xf32, #tpu.memory_space<vmem>>, vector<128x128xf32>
    tpu.vector_store %arg5[%c0_18, %c0_19], %43 {strides = array<i32>} : memref<128x128xf32, #tpu.memory_space<vmem>>, vector<128x128xf32>,
    return
  }
  func.func @transform_0(%arg0: i32) -> (i32, i32, i32) {
    %c0_i32 = arith.constant 0 : i32
    %c0_i32_0 = arith.constant 0 : i32
    %c0_i32_1 = arith.constant 0 : i32
    return %c0_i32, %arg0, %c0_i32_0 : i32, i32, i32
  }
  func.func @transform_1(%arg0: i32) -> (i32, i32) {
    %c0_i32 = arith.constant 0 : i32
    %c0_i32_0 = arith.constant 0 : i32
    %c0_i32_1 = arith.constant 0 : i32
    return %c0_i32, %c0_i32_0 : i32, i32
  }
  func.func @transform_2(%arg0: i32) -> (i32, i32) {
    %c0_i32 = arith.constant 0 : i32
    %c0_i32_0 = arith.constant 0 : i32
    %c0_i32_1 = arith.constant 0 : i32
    return %c0_i32, %c0_i32_0 : i32, i32
  }
  func.func @transform_3(%arg0: i32) -> (i32, i32) {
    %c0_i32 = arith.constant 0 : i32
    %c0_i32_0 = arith.constant 0 : i32
    %c0_i32_1 = arith.constant 0 : i32
    return %c0_i32, %c0_i32_0 : i32, i32
  }
  func.func @transform_4(%arg0: i32) -> (i32, i32) {
    %c0_i32 = arith.constant 0 : i32
    %c0_i32_0 = arith.constant 0 : i32
    return %arg0, %c0_i32 : i32, i32
  }
}

</mosaic_0001>

<llo_original>
// kernel: transition_layer.1
$region0: #{transition_layer.1}
  #allocation0 [shape = 'u32[]', space=smem, size = 0x4, offset = 0x4, fixed_abs, tag = 'smem constant byte address 0x4 - core index']
  #allocation1 [shape = 'u32[144,128]{1,0:T(1,128)}', space=vmem, size = 0x12000, scoped, tag = 'internal scratch']
  %s0 = inlined_call_operand.vmem [shape: bf16[4,128,16], index: 0, kind: input, shape index: {}]
  %s1 = inlined_call_operand.vmem [shape: f32[1,16], index: 1, kind: input, shape index: {}]
  %s2 = inlined_call_operand.vmem [shape: f32[1,16], index: 2, kind: input, shape index: {}]
  %s3 = inlined_call_operand.vmem [shape: bf16[16,128], index: 3, kind: input, shape index: {}]
  %s4 = inlined_call_operand.vmem [shape: f32[128,128], index: 4, kind: output, shape index: {}]
  %s5 = sld [smem:[#allocation0]]
  $region26: #{transition_layer.1} parent=0
    _
  %s7 = ssub.s32 1, %s5
  %s8 = scalar_select 0, %s7, %s5
  // Predicated region
  $region2: #{transition_layer.1} parent=0 // pred_check
    _
  $region3: #{transition_layer.1} parent=0 // pred_check_branch
    %10 = sbr.rel (0) target = $region5
  $region4: #{transition_layer.1} parent=0 // pred_region
    _
  $region5: #{transition_layer.1} parent=0 // pred_fallthru
    _
  // Predicated region
  $region6: #{transition_layer.1} parent=0 // pred_check
    _
  $region7: #{transition_layer.1} parent=0 // pred_check_branch
    %12 = sbr.rel (0) target = $region9
  $region8: #{transition_layer.1} parent=0 // pred_region
    _
  $region9: #{transition_layer.1} parent=0 // pred_fallthru
    _
  // Predicated region
  $region10: #{transition_layer.1} parent=0 // pred_check
    _
  $region11: #{transition_layer.1} parent=0 // pred_check_branch
    %14 = sbr.rel (0) target = $region13
  $region12: #{transition_layer.1} parent=0 // pred_region
    _
  $region13: #{transition_layer.1} parent=0 // pred_fallthru
    _
  // Predicated region
  $region14: #{transition_layer.1} parent=0 // pred_check
    _
  $region15: #{transition_layer.1} parent=0 // pred_check_branch
    %16 = sbr.rel (0) target = $region17
  $region16: #{transition_layer.1} parent=0 // pred_region
    _
  $region17: #{transition_layer.1} parent=0 // pred_fallthru
    _
  %v18 = vld [vmem:[%s1] sm:$0x1]
  %v19 = vld [vmem:[%s2] sm:$0x1]
  %v20 = vld [vmem:[%s0] sm:$0xf]
  %v21 = vld [vmem:[%s0 + $0x4] sm:$0xf]
  %v22 = vld [vmem:[%s0 + $0x8] sm:$0xf]
  %v23 = vld [vmem:[%s0 + $0xc] sm:$0xf]
  %v24 = vld [vmem:[%s0 + $0x10] sm:$0xf]
  %v25 = vld [vmem:[%s0 + $0x14] sm:$0xf]
  %v26 = vld [vmem:[%s0 + $0x18] sm:$0xf]
  %v27 = vld [vmem:[%s0 + $0x1c] sm:$0xf]
  %v28 = vld [vmem:[%s0 + $0x20] sm:$0xf]
  %v29 = vld [vmem:[%s0 + $0x24] sm:$0xf]
  %v30 = vld [vmem:[%s0 + $0x28] sm:$0xf]
  %v31 = vld [vmem:[%s0 + $0x2c] sm:$0xf]
  %v32 = vld [vmem:[%s0 + $0x30] sm:$0xf]
  %v33 = vld [vmem:[%s0 + $0x34] sm:$0xf]
  %v34 = vld [vmem:[%s0 + $0x38] sm:$0xf]
  %v35 = vld [vmem:[%s0 + $0x3c] sm:$0xf]
  %v36 = vunpack.c.l.bf16 %v20
  %v37 = vunpack.c.l.bf16 %v21
  %v38 = vunpack.c.l.bf16 %v22
  %v39 = vunpack.c.l.bf16 %v23
  %v40 = vunpack.c.l.bf16 %v24
  %v41 = vunpack.c.l.bf16 %v25
  %v42 = vunpack.c.l.bf16 %v26
  %v43 = vunpack.c.l.bf16 %v27
  %v44 = vunpack.c.l.bf16 %v28
  %v45 = vunpack.c.l.bf16 %v29
  %v46 = vunpack.c.l.bf16 %v30
  %v47 = vunpack.c.l.bf16 %v31
  %v48 = vunpack.c.l.bf16 %v32
  %v49 = vunpack.c.l.bf16 %v33
  %v50 = vunpack.c.l.bf16 %v34
  %v51 = vunpack.c.l.bf16 %v35
  %v53 = vlaneseq
  %v54 = vshrl.u32 %v53, 7
  %v55 = vsub.s32 0, %v54
  %v56 = vrot.slane %v18, %v55
  %v58 = vmul.f32 %v36, %v56
  %v59 = vmul.f32 %v37, %v56
  %v60 = vmul.f32 %v38, %v56
  %v61 = vmul.f32 %v39, %v56
  %v62 = vmul.f32 %v40, %v56
  %v63 = vmul.f32 %v41, %v56
  %v64 = vmul.f32 %v42, %v56
  %v65 = vmul.f32 %v43, %v56
  %v66 = vmul.f32 %v44, %v56
  %v67 = vmul.f32 %v45, %v56
  %v68 = vmul.f32 %v46, %v56
  %v69 = vmul.f32 %v47, %v56
  %v70 = vmul.f32 %v48, %v56
  %v71 = vmul.f32 %v49, %v56
  %v72 = vmul.f32 %v50, %v56
  %v73 = vmul.f32 %v51, %v56
  %v75 = vlaneseq
  %v76 = vshrl.u32 %v75, 7
  %v77 = vsub.s32 0, %v76
  %v78 = vrot.slane %v19, %v77
  %v80 = vadd.f32 %v58, %v78
  %v81 = vadd.f32 %v59, %v78
  %v82 = vadd.f32 %v60, %v78
  %v83 = vadd.f32 %v61, %v78
  %v84 = vadd.f32 %v62, %v78
  %v85 = vadd.f32 %v63, %v78
  %v86 = vadd.f32 %v64, %v78
  %v87 = vadd.f32 %v65, %v78
  %v88 = vadd.f32 %v66, %v78
  %v89 = vadd.f32 %v67, %v78
  %v90 = vadd.f32 %v68, %v78
  %v91 = vadd.f32 %v69, %v78
  %v92 = vadd.f32 %v70, %v78
  %v93 = vadd.f32 %v71, %v78
  %v94 = vadd.f32 %v72, %v78
  %v95 = vadd.f32 %v73, %v78
  %v96 = vmax.f32 %v80, 0.0
  %v97 = vmax.f32 %v81, 0.0
  %v98 = vmax.f32 %v82, 0.0
  %v99 = vmax.f32 %v83, 0.0
  %v100 = vmax.f32 %v84, 0.0
  %v101 = vmax.f32 %v85, 0.0
  %v102 = vmax.f32 %v86, 0.0
  %v103 = vmax.f32 %v87, 0.0
  %v104 = vmax.f32 %v88, 0.0
  %v105 = vmax.f32 %v89, 0.0
  %v106 = vmax.f32 %v90, 0.0
  %v107 = vmax.f32 %v91, 0.0
  %v108 = vmax.f32 %v92, 0.0
  %v109 = vmax.f32 %v93, 0.0
  %v110 = vmax.f32 %v94, 0.0
  %v111 = vmax.f32 %v95, 0.0
  %s112 = scalar_lea.vmem %s0, 64
  %v113 = vld [vmem:[%s112] sm:$0xf]
  %v114 = vld [vmem:[%s112 + $0x4] sm:$0xf]
  %v115 = vld [vmem:[%s112 + $0x8] sm:$0xf]
  %v116 = vld [vmem:[%s112 + $0xc] sm:$0xf]
  %v117 = vld [vmem:[%s112 + $0x10] sm:$0xf]
  %v118 = vld [vmem:[%s112 + $0x14] sm:$0xf]
  %v119 = vld [vmem:[%s112 + $0x18] sm:$0xf]
  %v120 = vld [vmem:[%s112 + $0x1c] sm:$0xf]
  %v121 = vld [vmem:[%s112 + $0x20] sm:$0xf]
  %v122 = vld [vmem:[%s112 + $0x24] sm:$0xf]
  %v123 = vld [vmem:[%s112 + $0x28] sm:$0xf]
  %v124 = vld [vmem:[%s112 + $0x2c] sm:$0xf]
  %v125 = vld [vmem:[%s112 + $0x30] sm:$0xf]
  %v126 = vld [vmem:[%s112 + $0x34] sm:$0xf]
  %v127 = vld [vmem:[%s112 + $0x38] sm:$0xf]
  %v128 = vld [vmem:[%s112 + $0x3c] sm:$0xf]
  %v129 = vunpack.c.l.bf16 %v113
  %v130 = vunpack.c.l.bf16 %v114
  %v131 = vunpack.c.l.bf16 %v115
  %v132 = vunpack.c.l.bf16 %v116
  %v133 = vunpack.c.l.bf16 %v117
  %v134 = vunpack.c.l.bf16 %v118
  %v135 = vunpack.c.l.bf16 %v119
  %v136 = vunpack.c.l.bf16 %v120
  %v137 = vunpack.c.l.bf16 %v121
  %v138 = vunpack.c.l.bf16 %v122
  %v139 = vunpack.c.l.bf16 %v123
  %v140 = vunpack.c.l.bf16 %v124
  %v141 = vunpack.c.l.bf16 %v125
  %v142 = vunpack.c.l.bf16 %v126
  %v143 = vunpack.c.l.bf16 %v127
  %v144 = vunpack.c.l.bf16 %v128
  %v145 = vmul.f32 %v129, %v56
  %v146 = vmul.f32 %v130, %v56
  %v147 = vmul.f32 %v131, %v56
  %v148 = vmul.f32 %v132, %v56
  %v149 = vmul.f32 %v133, %v56
  %v150 = vmul.f32 %v134, %v56
  %v151 = vmul.f32 %v135, %v56
  %v152 = vmul.f32 %v136, %v56
  %v153 = vmul.f32 %v137, %v56
  %v154 = vmul.f32 %v138, %v56
  %v155 = vmul.f32 %v139, %v56
  %v156 = vmul.f32 %v140, %v56
  %v157 = vmul.f32 %v141, %v56
  %v158 = vmul.f32 %v142, %v56
  %v159 = vmul.f32 %v143, %v56
  %v160 = vmul.f32 %v144, %v56
  %v161 = vadd.f32 %v145, %v78
  %v162 = vadd.f32 %v146, %v78
  %v163 = vadd.f32 %v147, %v78
  %v164 = vadd.f32 %v148, %v78
  %v165 = vadd.f32 %v149, %v78
  %v166 = vadd.f32 %v150, %v78
  %v167 = vadd.f32 %v151, %v78
  %v168 = vadd.f32 %v152, %v78
  %v169 = vadd.f32 %v153, %v78
  %v170 = vadd.f32 %v154, %v78
  %v171 = vadd.f32 %v155, %v78
  %v172 = vadd.f32 %v156, %v78
  %v173 = vadd.f32 %v157, %v78
  %v174 = vadd.f32 %v158, %v78
  %v175 = vadd.f32 %v159, %v78
  %v176 = vadd.f32 %v160, %v78
  %v177 = vmax.f32 %v161, 0.0
  %v178 = vmax.f32 %v162, 0.0
  %v179 = vmax.f32 %v163, 0.0
  %v180 = vmax.f32 %v164, 0.0
  %v181 = vmax.f32 %v165, 0.0
  %v182 = vmax.f32 %v166, 0.0
  %v183 = vmax.f32 %v167, 0.0
  %v184 = vmax.f32 %v168, 0.0
  %v185 = vmax.f32 %v169, 0.0
  %v186 = vmax.f32 %v170, 0.0
  %v187 = vmax.f32 %v171, 0.0
  %v188 = vmax.f32 %v172, 0.0
  %v189 = vmax.f32 %v173, 0.0
  %v190 = vmax.f32 %v174, 0.0
  %v191 = vmax.f32 %v175, 0.0
  %v192 = vmax.f32 %v176, 0.0
  %v193 = vadd.f32 %v96, %v177
  %v194 = vadd.f32 %v97, %v178
  %v195 = vadd.f32 %v98, %v179
  %v196 = vadd.f32 %v99, %v180
  %v197 = vadd.f32 %v100, %v181
  %v198 = vadd.f32 %v101, %v182
  %v199 = vadd.f32 %v102, %v183
  %v200 = vadd.f32 %v103, %v184
  %v201 = vadd.f32 %v104, %v185
  %v202 = vadd.f32 %v105, %v186
  %v203 = vadd.f32 %v106, %v187
  %v204 = vadd.f32 %v107, %v188
  %v205 = vadd.f32 %v108, %v189
  %v206 = vadd.f32 %v109, %v190
  %v207 = vadd.f32 %v110, %v191
  %v208 = vadd.f32 %v111, %v192
  %s209 = scalar_lea.vmem %s0, 128
  %v210 = vld [vmem:[%s209] sm:$0xf]
  %v211 = vld [vmem:[%s209 + $0x4] sm:$0xf]
  %v212 = vld [vmem:[%s209 + $0x8] sm:$0xf]
  %v213 = vld [vmem:[%s209 + $0xc] sm:$0xf]
  %v214 = vld [vmem:[%s209 + $0x10] sm:$0xf]
  %v215 = vld [vmem:[%s209 + $0x14] sm:$0xf]
  %v216 = vld [vmem:[%s209 + $0x18] sm:$0xf]
  %v217 = vld [vmem:[%s209 + $0x1c] sm:$0xf]
  %v218 = vld [vmem:[%s209 + $0x20] sm:$0xf]
  %v219 = vld [vmem:[%s209 + $0x24] sm:$0xf]
  %v220 = vld [vmem:[%s209 + $0x28] sm:$0xf]
  %v221 = vld [vmem:[%s209 + $0x2c] sm:$0xf]
  %v222 = vld [vmem:[%s209 + $0x30] sm:$0xf]
  %v223 = vld [vmem:[%s209 + $0x34] sm:$0xf]
  %v224 = vld [vmem:[%s209 + $0x38] sm:$0xf]
  %v225 = vld [vmem:[%s209 + $0x3c] sm:$0xf]
  %v226 = vunpack.c.l.bf16 %v210
  %v227 = vunpack.c.l.bf16 %v211
  %v228 = vunpack.c.l.bf16 %v212
  %v229 = vunpack.c.l.bf16 %v213
  %v230 = vunpack.c.l.bf16 %v214
  %v231 = vunpack.c.l.bf16 %v215
  %v232 = vunpack.c.l.bf16 %v216
  %v233 = vunpack.c.l.bf16 %v217
  %v234 = vunpack.c.l.bf16 %v218
  %v235 = vunpack.c.l.bf16 %v219
  %v236 = vunpack.c.l.bf16 %v220
  %v237 = vunpack.c.l.bf16 %v221
  %v238 = vunpack.c.l.bf16 %v222
  %v239 = vunpack.c.l.bf16 %v223
  %v240 = vunpack.c.l.bf16 %v224
  %v241 = vunpack.c.l.bf16 %v225
  %v242 = vmul.f32 %v226, %v56
  %v243 = vmul.f32 %v227, %v56
  %v244 = vmul.f32 %v228, %v56
  %v245 = vmul.f32 %v229, %v56
  %v246 = vmul.f32 %v230, %v56
  %v247 = vmul.f32 %v231, %v56
  %v248 = vmul.f32 %v232, %v56
  %v249 = vmul.f32 %v233, %v56
  %v250 = vmul.f32 %v234, %v56
  %v251 = vmul.f32 %v235, %v56
  %v252 = vmul.f32 %v236, %v56
  %v253 = vmul.f32 %v237, %v56
  %v254 = vmul.f32 %v238, %v56
  %v255 = vmul.f32 %v239, %v56
  %v256 = vmul.f32 %v240, %v56
  %v257 = vmul.f32 %v241, %v56
  %v258 = vadd.f32 %v242, %v78
  %v259 = vadd.f32 %v243, %v78
  %v260 = vadd.f32 %v244, %v78
  %v261 = vadd.f32 %v245, %v78
  %v262 = vadd.f32 %v246, %v78
  %v263 = vadd.f32 %v247, %v78
  %v264 = vadd.f32 %v248, %v78
  %v265 = vadd.f32 %v249, %v78
  %v266 = vadd.f32 %v250, %v78
  %v267 = vadd.f32 %v251, %v78
  %v268 = vadd.f32 %v252, %v78
  %v269 = vadd.f32 %v253, %v78
  %v270 = vadd.f32 %v254, %v78
  %v271 = vadd.f32 %v255, %v78
  %v272 = vadd.f32 %v256, %v78
  %v273 = vadd.f32 %v257, %v78
  %v274 = vmax.f32 %v258, 0.0
  %v275 = vmax.f32 %v259, 0.0
  %v276 = vmax.f32 %v260, 0.0
  %v277 = vmax.f32 %v261, 0.0
  %v278 = vmax.f32 %v262, 0.0
  %v279 = vmax.f32 %v263, 0.0
  %v280 = vmax.f32 %v264, 0.0
  %v281 = vmax.f32 %v265, 0.0
  %v282 = vmax.f32 %v266, 0.0
  %v283 = vmax.f32 %v267, 0.0
  %v284 = vmax.f32 %v268, 0.0
  %v285 = vmax.f32 %v269, 0.0
  %v286 = vmax.f32 %v270, 0.0
  %v287 = vmax.f32 %v271, 0.0
  %v288 = vmax.f32 %v272, 0.0
  %v289 = vmax.f32 %v273, 0.0
  %s290 = scalar_lea.vmem %s0, 192
  %v291 = vld [vmem:[%s290] sm:$0xf]
  %v292 = vld [vmem:[%s290 + $0x4] sm:$0xf]
  %v293 = vld [vmem:[%s290 + $0x8] sm:$0xf]
  %v294 = vld [vmem:[%s290 + $0xc] sm:$0xf]
  %v295 = vld [vmem:[%s290 + $0x10] sm:$0xf]
  %v296 = vld [vmem:[%s290 + $0x14] sm:$0xf]
  %v297 = vld [vmem:[%s290 + $0x18] sm:$0xf]
  %v298 = vld [vmem:[%s290 + $0x1c] sm:$0xf]
  %v299 = vld [vmem:[%s290 + $0x20] sm:$0xf]
  %v300 = vld [vmem:[%s290 + $0x24] sm:$0xf]
  %v301 = vld [vmem:[%s290 + $0x28] sm:$0xf]
  %v302 = vld [vmem:[%s290 + $0x2c] sm:$0xf]
  %v303 = vld [vmem:[%s290 + $0x30] sm:$0xf]
  %v304 = vld [vmem:[%s290 + $0x34] sm:$0xf]
  %v305 = vld [vmem:[%s290 + $0x38] sm:$0xf]
  %v306 = vld [vmem:[%s290 + $0x3c] sm:$0xf]
  %v307 = vunpack.c.l.bf16 %v291
  %v308 = vunpack.c.l.bf16 %v292
  %v309 = vunpack.c.l.bf16 %v293
  %v310 = vunpack.c.l.bf16 %v294
  %v311 = vunpack.c.l.bf16 %v295
  %v312 = vunpack.c.l.bf16 %v296
  %v313 = vunpack.c.l.bf16 %v297
  %v314 = vunpack.c.l.bf16 %v298
  %v315 = vunpack.c.l.bf16 %v299
  %v316 = vunpack.c.l.bf16 %v300
  %v317 = vunpack.c.l.bf16 %v301
  %v318 = vunpack.c.l.bf16 %v302
  %v319 = vunpack.c.l.bf16 %v303
  %v320 = vunpack.c.l.bf16 %v304
  %v321 = vunpack.c.l.bf16 %v305
  %v322 = vunpack.c.l.bf16 %v306
  %v323 = vmul.f32 %v307, %v56
  %v324 = vmul.f32 %v308, %v56
  %v325 = vmul.f32 %v309, %v56
  %v326 = vmul.f32 %v310, %v56
  %v327 = vmul.f32 %v311, %v56
  %v328 = vmul.f32 %v312, %v56
  %v329 = vmul.f32 %v313, %v56
  %v330 = vmul.f32 %v314, %v56
  %v331 = vmul.f32 %v315, %v56
  %v332 = vmul.f32 %v316, %v56
  %v333 = vmul.f32 %v317, %v56
  %v334 = vmul.f32 %v318, %v56
  %v335 = vmul.f32 %v319, %v56
  %v336 = vmul.f32 %v320, %v56
  %v337 = vmul.f32 %v321, %v56
  %v338 = vmul.f32 %v322, %v56
  %v339 = vadd.f32 %v323, %v78
  %v340 = vadd.f32 %v324, %v78
  %v341 = vadd.f32 %v325, %v78
  %v342 = vadd.f32 %v326, %v78
  %v343 = vadd.f32 %v327, %v78
  %v344 = vadd.f32 %v328, %v78
  %v345 = vadd.f32 %v329, %v78
  %v346 = vadd.f32 %v330, %v78
  %v347 = vadd.f32 %v331, %v78
  %v348 = vadd.f32 %v332, %v78
  %v349 = vadd.f32 %v333, %v78
  %v350 = vadd.f32 %v334, %v78
  %v351 = vadd.f32 %v335, %v78
  %v352 = vadd.f32 %v336, %v78
  %v353 = vadd.f32 %v337, %v78
  %v354 = vadd.f32 %v338, %v78
  %v355 = vmax.f32 %v339, 0.0
  %v356 = vmax.f32 %v340, 0.0
  %v357 = vmax.f32 %v341, 0.0
  %v358 = vmax.f32 %v342, 0.0
  %v359 = vmax.f32 %v343, 0.0
  %v360 = vmax.f32 %v344, 0.0
  %v361 = vmax.f32 %v345, 0.0
  %v362 = vmax.f32 %v346, 0.0
  %v363 = vmax.f32 %v347, 0.0
  %v364 = vmax.f32 %v348, 0.0
  %v365 = vmax.f32 %v349, 0.0
  %v366 = vmax.f32 %v350, 0.0
  %v367 = vmax.f32 %v351, 0.0
  %v368 = vmax.f32 %v352, 0.0
  %v369 = vmax.f32 %v353, 0.0
  %v370 = vmax.f32 %v354, 0.0
  %v371 = vadd.f32 %v274, %v355
  %v372 = vadd.f32 %v275, %v356
  %v373 = vadd.f32 %v276, %v357
  %v374 = vadd.f32 %v277, %v358
  %v375 = vadd.f32 %v278, %v359
  %v376 = vadd.f32 %v279, %v360
  %v377 = vadd.f32 %v280, %v361
  %v378 = vadd.f32 %v281, %v362
  %v379 = vadd.f32 %v282, %v363
  %v380 = vadd.f32 %v283, %v364
  %v381 = vadd.f32 %v284, %v365
  %v382 = vadd.f32 %v285, %v366
  %v383 = vadd.f32 %v286, %v367
  %v384 = vadd.f32 %v287, %v368
  %v385 = vadd.f32 %v288, %v369
  %v386 = vadd.f32 %v289, %v370
  %v387 = vadd.f32 %v193, %v371
  %v388 = vadd.f32 %v194, %v372
  %v389 = vadd.f32 %v195, %v373
  %v390 = vadd.f32 %v196, %v374
  %v391 = vadd.f32 %v197, %v375
  %v392 = vadd.f32 %v198, %v376
  %v393 = vadd.f32 %v199, %v377
  %v394 = vadd.f32 %v200, %v378
  %v395 = vadd.f32 %v201, %v379
  %v396 = vadd.f32 %v202, %v380
  %v397 = vadd.f32 %v203, %v381
  %v398 = vadd.f32 %v204, %v382
  %v399 = vadd.f32 %v205, %v383
  %v400 = vadd.f32 %v206, %v384
  %v401 = vadd.f32 %v207, %v385
  %v402 = vadd.f32 %v208, %v386
  %v403 = vpack.c.bf16 %v388, %v387
  %v404 = vpack.c.bf16 %v390, %v389
  %v405 = vpack.c.bf16 %v392, %v391
  %v406 = vpack.c.bf16 %v394, %v393
  %v407 = vpack.c.bf16 %v396, %v395
  %v408 = vpack.c.bf16 %v398, %v397
  %v409 = vpack.c.bf16 %v400, %v399
  %v410 = vpack.c.bf16 %v402, %v401
  %v411 = vld [vmem:[%s3] sm:$0xf]
  %v412 = vld [vmem:[%s3 + $0x4] sm:$0xf]
  %v415 = vunpack.c.l.b16 %v411
  %v416 = vunpack.c.l.b16 %v412
  %v417 = vpack.c.b16 %v416, %v415
  %vm419 = vcmask 130048
  %v421 = vsel %vm419, %v403, 0
  %v424 = vsel %vm419, %v404, 0
  %v427 = vsel %vm419, %v405, 0
  %v430 = vsel %vm419, %v406, 0
  %v433 = vsel %vm419, %v407, 0
  %v436 = vsel %vm419, %v408, 0
  %v439 = vsel %vm419, %v409, 0
  %v442 = vsel %vm419, %v410, 0
  %444 = vmatprep.subr.bf16.mxu0 0
  %445 = vmatpush1.bf16.msra.mxu0 %v417
  %446 = vmatprep.subr.bf16.mxu0 0
  %447 = vmatpush1.bf16.msra.mxu0 0
  %448 = vmatprep.subr.bf16.mxu0 0
  %449 = vmatpush1.bf16.msra.mxu0 0
  %450 = vmatprep.subr.bf16.mxu0 0
  %451 = vmatpush1.bf16.msra.mxu0 0
  %452 = vmatprep.subr.bf16.mxu0 0
  %453 = vmatpush1.bf16.msra.mxu0 0
  %454 = vmatprep.subr.bf16.mxu0 0
  %455 = vmatpush1.bf16.msra.mxu0 0
  %456 = vmatprep.subr.bf16.mxu0 0
  %457 = vmatpush1.bf16.msra.mxu0 0
  %458 = vmatprep.subr.bf16.mxu0 0
  %459 = vmatpush1.bf16.msra.mxu0 0
  %460 = vmatprep.subr.bf16.mxu0 0
  %461 = vmatpush1.bf16.msra.mxu0 0
  %462 = vmatprep.subr.bf16.mxu0 0
  %463 = vmatpush1.bf16.msra.mxu0 0
  %464 = vmatprep.subr.bf16.mxu0 0
  %465 = vmatpush1.bf16.msra.mxu0 0
  %466 = vmatprep.subr.bf16.mxu0 0
  %467 = vmatpush1.bf16.msra.mxu0 0
  %468 = vmatprep.subr.bf16.mxu0 0
  %469 = vmatpush1.bf16.msra.mxu0 0
  %470 = vmatprep.subr.bf16.mxu0 0
  %471 = vmatpush1.bf16.msra.mxu0 0
  %472 = vmatprep.subr.bf16.mxu0 0
  %473 = vmatpush1.bf16.msra.mxu0 0
  %474 = vmatprep.subr.bf16.mxu0 0
  %475 = vmatpush1.bf16.msra.mxu0 0
  %476 = vmatprep.mubr.bf16.mxu0 0
  %477 = vmatmul.mubr.bf16.gmra.mrb[0].mxu0 %v421
  %v478 = vpop.f32.mrb[0].mxu0
  %v479 = vadd.f32 0.0, %v478
  %v480 = vpop.f32.mrb[0].mxu0
  %v481 = vpop.f32.mrb[0].mxu0
  %v482 = vadd.f32 0.0, %v481
  %v483 = vpop.f32.mrb[0].mxu0
  %484 = vmatprep.mubr.bf16.mxu0 0
  %485 = vmatmul.mubr.bf16.gmra.mrb[0].mxu0 %v424
  %v486 = vpop.f32.mrb[0].mxu0
  %v487 = vadd.f32 0.0, %v486
  %v488 = vpop.f32.mrb[0].mxu0
  %v489 = vpop.f32.mrb[0].mxu0
  %v490 = vadd.f32 0.0, %v489
  %v491 = vpop.f32.mrb[0].mxu0
  %492 = vmatprep.mubr.bf16.mxu0 0
  %493 = vmatmul.mubr.bf16.gmra.mrb[0].mxu0 %v427
  %v494 = vpop.f32.mrb[0].mxu0
  %v495 = vadd.f32 0.0, %v494
  %v496 = vpop.f32.mrb[0].mxu0
  %v497 = vpop.f32.mrb[0].mxu0
  %v498 = vadd.f32 0.0, %v497
  %v499 = vpop.f32.mrb[0].mxu0
  %500 = vmatprep.mubr.bf16.mxu0 0
  %501 = vmatmul.mubr.bf16.gmra.mrb[0].mxu0 %v430
  %v502 = vpop.f32.mrb[0].mxu0
  %v503 = vadd.f32 0.0, %v502
  %v504 = vpop.f32.mrb[0].mxu0
  %v505 = vpop.f32.mrb[0].mxu0
  %v506 = vadd.f32 0.0, %v505
  %v507 = vpop.f32.mrb[0].mxu0
  %508 = vmatprep.mubr.bf16.mxu0 0
  %509 = vmatmul.mubr.bf16.gmra.mrb[0].mxu0 %v433
  %v510 = vpop.f32.mrb[0].mxu0
  %v511 = vadd.f32 0.0, %v510
  %v512 = vpop.f32.mrb[0].mxu0
  %v513 = vpop.f32.mrb[0].mxu0
  %v514 = vadd.f32 0.0, %v513
  %v515 = vpop.f32.mrb[0].mxu0
  %516 = vmatprep.mubr.bf16.mxu0 0
  %517 = vmatmul.mubr.bf16.gmra.mrb[0].mxu0 %v436
  %v518 = vpop.f32.mrb[0].mxu0
  %v519 = vadd.f32 0.0, %v518
  %v520 = vpop.f32.mrb[0].mxu0
  %v521 = vpop.f32.mrb[0].mxu0
  %v522 = vadd.f32 0.0, %v521
  %v523 = vpop.f32.mrb[0].mxu0
  %524 = vmatprep.mubr.bf16.mxu0 0
  %525 = vmatmul.mubr.bf16.gmra.mrb[0].mxu0 %v439
  %v526 = vpop.f32.mrb[0].mxu0
  %v527 = vadd.f32 0.0, %v526
  %v528 = vpop.f32.mrb[0].mxu0
  %v529 = vpop.f32.mrb[0].mxu0
  %v530 = vadd.f32 0.0, %v529
  %v531 = vpop.f32.mrb[0].mxu0
  %532 = vmatprep.mubr.bf16.mxu0 0
  %533 = vmatmul.mubr.bf16.gmra.mrb[0].mxu0 %v442
  %v534 = vpop.f32.mrb[0].mxu0
  %v535 = vadd.f32 0.0, %v534
  %v536 = vpop.f32.mrb[0].mxu0
  %v537 = vpop.f32.mrb[0].mxu0
  %v538 = vadd.f32 0.0, %v537
  %v539 = vpop.f32.mrb[0].mxu0
  %540 = vdwg.mxu0
  %541 = vst [vmem:[%s4] sm:$0xff] %v479
  %542 = vst [vmem:[%s4 + $0x8] sm:$0xff] %v482
  %543 = vst [vmem:[%s4 + $0x10] sm:$0xff] %v487
  %544 = vst [vmem:[%s4 + $0x18] sm:$0xff] %v490
  %545 = vst [vmem:[%s4 + $0x20] sm:$0xff] %v495
  %546 = vst [vmem:[%s4 + $0x28] sm:$0xff] %v498
  %547 = vst [vmem:[%s4 + $0x30] sm:$0xff] %v503
  %548 = vst [vmem:[%s4 + $0x38] sm:$0xff] %v506
  %549 = vst [vmem:[%s4 + $0x40] sm:$0xff] %v511
  %550 = vst [vmem:[%s4 + $0x48] sm:$0xff] %v514
  %551 = vst [vmem:[%s4 + $0x50] sm:$0xff] %v519
  %552 = vst [vmem:[%s4 + $0x58] sm:$0xff] %v522
  %553 = vst [vmem:[%s4 + $0x60] sm:$0xff] %v527
  %554 = vst [vmem:[%s4 + $0x68] sm:$0xff] %v530
  %555 = vst [vmem:[%s4 + $0x70] sm:$0xff] %v535
  %556 = vst [vmem:[%s4 + $0x78] sm:$0xff] %v538
  // Predicated region
  $region18: #{transition_layer.1} parent=0 // pred_check
    _
  $region19: #{transition_layer.1} parent=0 // pred_check_branch
    %558 = sbr.rel (0) target = $region21
  $region20: #{transition_layer.1} parent=0 // pred_region
    _
  $region21: #{transition_layer.1} parent=0 // pred_fallthru
    _
  // Predicated region
  $region22: #{transition_layer.1} parent=0 // pred_check
    _
  $region23: #{transition_layer.1} parent=0 // pred_check_branch
    %560 = sbr.rel (0) target = $region25
  $region24: #{transition_layer.1} parent=0 // pred_region
    _
  $region25: #{transition_layer.1} parent=0 // pred_fallthru
    _

// kernel: transition_layer.1
$region0: #{transition_layer.1}
  #allocation0 [shape = 'u32[]', space=smem, size = 0x4, offset = 0x4, fixed_abs, tag = 'smem constant byte address 0x4 - core index']
  #allocation1 [shape = 'u32[144,128]{1,0:T(1,128)}', space=vmem, size = 0x12000, scoped, tag = 'internal scratch']
  %s0 = inlined_call_operand.vmem [shape: bf16[4,128,16], index: 0, kind: input, shape index: {}]
  %s1 = inlined_call_operand.vmem [shape: f32[1,16], index: 1, kind: input, shape index: {}]
  %s2 = inlined_call_operand.vmem [shape: f32[1,16], index: 2, kind: input, shape index: {}]
  %s3 = inlined_call_operand.vmem [shape: bf16[16,128], index: 3, kind: input, shape index: {}]
  %s4 = inlined_call_operand.vmem [shape: f32[128,128], index: 4, kind: output, shape index: {}]
  %s5 = sld [smem:[#allocation0]]
  $region26: #{transition_layer.1} parent=0
    _
  %s7 = ssub.s32 1, %s5
  %s8 = scalar_select 0, %s7, %s5
  // Predicated region
  $region2: #{transition_layer.1} parent=0 // pred_check
    _
  $region3: #{transition_layer.1} parent=0 // pred_check_branch
    %10 = sbr.rel (0) target = $region5
  $region4: #{transition_layer.1} parent=0 // pred_region
    _
  $region5: #{transition_layer.1} parent=0 // pred_fallthru
    _
  // Predicated region
  $region6: #{transition_layer.1} parent=0 // pred_check
    _
  $region7: #{transition_layer.1} parent=0 // pred_check_branch
    %12 = sbr.rel (0) target = $region9
  $region8: #{transition_layer.1} parent=0 // pred_region
    _
  $region9: #{transition_layer.1} parent=0 // pred_fallthru
    _
  // Predicated region
  $region10: #{transition_layer.1} parent=0 // pred_check
    _
  $region11: #{transition_layer.1} parent=0 // pred_check_branch
    %14 = sbr.rel (0) target = $region13
  $region12: #{transition_layer.1} parent=0 // pred_region
    _
  $region13: #{transition_layer.1} parent=0 // pred_fallthru
    _
  // Predicated region
  $region14: #{transition_layer.1} parent=0 // pred_check
    _
  $region15: #{transition_layer.1} parent=0 // pred_check_branch
    %16 = sbr.rel (0) target = $region17
  $region16: #{transition_layer.1} parent=0 // pred_region
    _
  $region17: #{transition_layer.1} parent=0 // pred_fallthru
    _
  %v18 = vld [vmem:[%s1] sm:$0x1]
  %v19 = vld [vmem:[%s2] sm:$0x1]
  %v20 = vld [vmem:[%s0] sm:$0xf]
  %v21 = vld [vmem:[%s0 + $0x4] sm:$0xf]
  %v22 = vld [vmem:[%s0 + $0x8] sm:$0xf]
  %v23 = vld [vmem:[%s0 + $0xc] sm:$0xf]
  %v24 = vld [vmem:[%s0 + $0x10] sm:$0xf]
  %v25 = vld [vmem:[%s0 + $0x14] sm:$0xf]
  %v26 = vld [vmem:[%s0 + $0x18] sm:$0xf]
  %v27 = vld [vmem:[%s0 + $0x1c] sm:$0xf]
  %v28 = vld [vmem:[%s0 + $0x20] sm:$0xf]
  %v29 = vld [vmem:[%s0 + $0x24] sm:$0xf]
  %v30 = vld [vmem:[%s0 + $0x28] sm:$0xf]
  %v31 = vld [vmem:[%s0 + $0x2c] sm:$0xf]
  %v32 = vld [vmem:[%s0 + $0x30] sm:$0xf]
  %v33 = vld [vmem:[%s0 + $0x34] sm:$0xf]
  %v34 = vld [vmem:[%s0 + $0x38] sm:$0xf]
  %v35 = vld [vmem:[%s0 + $0x3c] sm:$0xf]
  %v36 = vunpack.c.l.bf16 %v20
  %v37 = vunpack.c.l.bf16 %v21
  %v38 = vunpack.c.l.bf16 %v22
  %v39 = vunpack.c.l.bf16 %v23
  %v40 = vunpack.c.l.bf16 %v24
  %v41 = vunpack.c.l.bf16 %v25
  %v42 = vunpack.c.l.bf16 %v26
  %v43 = vunpack.c.l.bf16 %v27
  %v44 = vunpack.c.l.bf16 %v28
  %v45 = vunpack.c.l.bf16 %v29
  %v46 = vunpack.c.l.bf16 %v30
  %v47 = vunpack.c.l.bf16 %v31
  %v48 = vunpack.c.l.bf16 %v32
  %v49 = vunpack.c.l.bf16 %v33
  %v50 = vunpack.c.l.bf16 %v34
  %v51 = vunpack.c.l.bf16 %v35
  %v53 = vlaneseq
  %v54 = vshrl.u32 %v53, 7
  %v55 = vsub.s32 0, %v54
  %v56 = vrot.slane %v18, %v55
  %v58 = vmul.f32 %v36, %v56
  %v59 = vmul.f32 %v37, %v56
  %v60 = vmul.f32 %v38, %v56
  %v61 = vmul.f32 %v39, %v56
  %v62 = vmul.f32 %v40, %v56
  %v63 = vmul.f32 %v41, %v56
  %v64 = vmul.f32 %v42, %v56
  %v65 = vmul.f32 %v43, %v56
  %v66 = vmul.f32 %v44, %v56
  %v67 = vmul.f32 %v45, %v56
  %v68 = vmul.f32 %v46, %v56
  %v69 = vmul.f32 %v47, %v56
  %v70 = vmul.f32 %v48, %v56
  %v71 = vmul.f32 %v49, %v56
  %v72 = vmul.f32 %v50, %v56
  %v73 = vmul.f32 %v51, %v56
  %v75 = vlaneseq
  %v76 = vshrl.u32 %v75, 7
  %v77 = vsub.s32 0, %v76
  %v78 = vrot.slane %v19, %v77
  %v80 = vadd.f32 %v58, %v78
  %v81 = vadd.f32 %v59, %v78
  %v82 = vadd.f32 %v60, %v78
  %v83 = vadd.f32 %v61, %v78
  %v84 = vadd.f32 %v62, %v78
  %v85 = vadd.f32 %v63, %v78
  %v86 = vadd.f32 %v64, %v78
  %v87 = vadd.f32 %v65, %v78
  %v88 = vadd.f32 %v66, %v78
  %v89 = vadd.f32 %v67, %v78
  %v90 = vadd.f32 %v68, %v78
  %v91 = vadd.f32 %v69, %v78
  %v92 = vadd.f32 %v70, %v78
  %v93 = vadd.f32 %v71, %v78
  %v94 = vadd.f32 %v72, %v78
  %v95 = vadd.f32 %v73, %v78
  %v96 = vmax.f32 %v80, 0.0
  %v97 = vmax.f32 %v81, 0.0
  %v98 = vmax.f32 %v82, 0.0
  %v99 = vmax.f32 %v83, 0.0
  %v100 = vmax.f32 %v84, 0.0
  %v101 = vmax.f32 %v85, 0.0
  %v102 = vmax.f32 %v86, 0.0
  %v103 = vmax.f32 %v87, 0.0
  %v104 = vmax.f32 %v88, 0.0
  %v105 = vmax.f32 %v89, 0.0
  %v106 = vmax.f32 %v90, 0.0
  %v107 = vmax.f32 %v91, 0.0
  %v108 = vmax.f32 %v92, 0.0
  %v109 = vmax.f32 %v93, 0.0
  %v110 = vmax.f32 %v94, 0.0
  %v111 = vmax.f32 %v95, 0.0
  %s112 = scalar_lea.vmem %s0, 64
  %v113 = vld [vmem:[%s112] sm:$0xf]
  %v114 = vld [vmem:[%s112 + $0x4] sm:$0xf]
  %v115 = vld [vmem:[%s112 + $0x8] sm:$0xf]
  %v116 = vld [vmem:[%s112 + $0xc] sm:$0xf]
  %v117 = vld [vmem:[%s112 + $0x10] sm:$0xf]
  %v118 = vld [vmem:[%s112 + $0x14] sm:$0xf]
  %v119 = vld [vmem:[%s112 + $0x18] sm:$0xf]
  %v120 = vld [vmem:[%s112 + $0x1c] sm:$0xf]
  %v121 = vld [vmem:[%s112 + $0x20] sm:$0xf]
  %v122 = vld [vmem:[%s112 + $0x24] sm:$0xf]
  %v123 = vld [vmem:[%s112 + $0x28] sm:$0xf]
  %v124 = vld [vmem:[%s112 + $0x2c] sm:$0xf]
  %v125 = vld [vmem:[%s112 + $0x30] sm:$0xf]
  %v126 = vld [vmem:[%s112 + $0x34] sm:$0xf]
  %v127 = vld [vmem:[%s112 + $0x38] sm:$0xf]
  %v128 = vld [vmem:[%s112 + $0x3c] sm:$0xf]
  %v129 = vunpack.c.l.bf16 %v113
  %v130 = vunpack.c.l.bf16 %v114
  %v131 = vunpack.c.l.bf16 %v115
  %v132 = vunpack.c.l.bf16 %v116
  %v133 = vunpack.c.l.bf16 %v117
  %v134 = vunpack.c.l.bf16 %v118
  %v135 = vunpack.c.l.bf16 %v119
  %v136 = vunpack.c.l.bf16 %v120
  %v137 = vunpack.c.l.bf16 %v121
  %v138 = vunpack.c.l.bf16 %v122
  %v139 = vunpack.c.l.bf16 %v123
  %v140 = vunpack.c.l.bf16 %v124
  %v141 = vunpack.c.l.bf16 %v125
  %v142 = vunpack.c.l.bf16 %v126
  %v143 = vunpack.c.l.bf16 %v127
  %v144 = vunpack.c.l.bf16 %v128
  %v145 = vmul.f32 %v129, %v56
  %v146 = vmul.f32 %v130, %v56
  %v147 = vmul.f32 %v131, %v56
  %v148 = vmul.f32 %v132, %v56
  %v149 = vmul.f32 %v133, %v56
  %v150 = vmul.f32 %v134, %v56
  %v151 = vmul.f32 %v135, %v56
  %v152 = vmul.f32 %v136, %v56
  %v153 = vmul.f32 %v137, %v56
  %v154 = vmul.f32 %v138, %v56
  %v155 = vmul.f32 %v139, %v56
  %v156 = vmul.f32 %v140, %v56
  %v157 = vmul.f32 %v141, %v56
  %v158 = vmul.f32 %v142, %v56
  %v159 = vmul.f32 %v143, %v56
  %v160 = vmul.f32 %v144, %v56
  %v161 = vadd.f32 %v145, %v78
  %v162 = vadd.f32 %v146, %v78
  %v163 = vadd.f32 %v147, %v78
  %v164 = vadd.f32 %v148, %v78
  %v165 = vadd.f32 %v149, %v78
  %v166 = vadd.f32 %v150, %v78
  %v167 = vadd.f32 %v151, %v78
  %v168 = vadd.f32 %v152, %v78
  %v169 = vadd.f32 %v153, %v78
  %v170 = vadd.f32 %v154, %v78
  %v171 = vadd.f32 %v155, %v78
  %v172 = vadd.f32 %v156, %v78
  %v173 = vadd.f32 %v157, %v78
  %v174 = vadd.f32 %v158, %v78
  %v175 = vadd.f32 %v159, %v78
  %v176 = vadd.f32 %v160, %v78
  %v177 = vmax.f32 %v161, 0.0
  %v178 = vmax.f32 %v162, 0.0
  %v179 = vmax.f32 %v163, 0.0
  %v180 = vmax.f32 %v164, 0.0
  %v181 = vmax.f32 %v165, 0.0
  %v182 = vmax.f32 %v166, 0.0
  %v183 = vmax.f32 %v167, 0.0
  %v184 = vmax.f32 %v168, 0.0
  %v185 = vmax.f32 %v169, 0.0
  %v186 = vmax.f32 %v170, 0.0
  %v187 = vmax.f32 %v171, 0.0
  %v188 = vmax.f32 %v172, 0.0
  %v189 = vmax.f32 %v173, 0.0
  %v190 = vmax.f32 %v174, 0.0
  %v191 = vmax.f32 %v175, 0.0
  %v192 = vmax.f32 %v176, 0.0
  %v193 = vadd.f32 %v96, %v177
  %v194 = vadd.f32 %v97, %v178
  %v195 = vadd.f32 %v98, %v179
  %v196 = vadd.f32 %v99, %v180
  %v197 = vadd.f32 %v100, %v181
  %v198 = vadd.f32 %v101, %v182
  %v199 = vadd.f32 %v102, %v183
  %v200 = vadd.f32 %v103, %v184
  %v201 = vadd.f32 %v104, %v185
  %v202 = vadd.f32 %v105, %v186
  %v203 = vadd.f32 %v106, %v187
  %v204 = vadd.f32 %v107, %v188
  %v205 = vadd.f32 %v108, %v189
  %v206 = vadd.f32 %v109, %v190
  %v207 = vadd.f32 %v110, %v191
  %v208 = vadd.f32 %v111, %v192
  %s209 = scalar_lea.vmem %s0, 128
  %v210 = vld [vmem:[%s209] sm:$0xf]
  %v211 = vld [vmem:[%s209 + $0x4] sm:$0xf]
  %v212 = vld [vmem:[%s209 + $0x8] sm:$0xf]
  %v213 = vld [vmem:[%s209 + $0xc] sm:$0xf]
  %v214 = vld [vmem:[%s209 + $0x10] sm:$0xf]
  %v215 = vld [vmem:[%s209 + $0x14] sm:$0xf]
  %v216 = vld [vmem:[%s209 + $0x18] sm:$0xf]
  %v217 = vld [vmem:[%s209 + $0x1c] sm:$0xf]
  %v218 = vld [vmem:[%s209 + $0x20] sm:$0xf]
  %v219 = vld [vmem:[%s209 + $0x24] sm:$0xf]
  %v220 = vld [vmem:[%s209 + $0x28] sm:$0xf]
  %v221 = vld [vmem:[%s209 + $0x2c] sm:$0xf]
  %v222 = vld [vmem:[%s209 + $0x30] sm:$0xf]
  %v223 = vld [vmem:[%s209 + $0x34] sm:$0xf]
  %v224 = vld [vmem:[%s209 + $0x38] sm:$0xf]
  %v225 = vld [vmem:[%s209 + $0x3c] sm:$0xf]
  %v226 = vunpack.c.l.bf16 %v210
  %v227 = vunpack.c.l.bf16 %v211
  %v228 = vunpack.c.l.bf16 %v212
  %v229 = vunpack.c.l.bf16 %v213
  %v230 = vunpack.c.l.bf16 %v214
  %v231 = vunpack.c.l.bf16 %v215
  %v232 = vunpack.c.l.bf16 %v216
  %v233 = vunpack.c.l.bf16 %v217
  %v234 = vunpack.c.l.bf16 %v218
  %v235 = vunpack.c.l.bf16 %v219
  %v236 = vunpack.c.l.bf16 %v220
  %v237 = vunpack.c.l.bf16 %v221
  %v238 = vunpack.c.l.bf16 %v222
  %v239 = vunpack.c.l.bf16 %v223
  %v240 = vunpack.c.l.bf16 %v224
  %v241 = vunpack.c.l.bf16 %v225
  %v242 = vmul.f32 %v226, %v56
  %v243 = vmul.f32 %v227, %v56
  %v244 = vmul.f32 %v228, %v56
  %v245 = vmul.f32 %v229, %v56
  %v246 = vmul.f32 %v230, %v56
  %v247 = vmul.f32 %v231, %v56
  %v248 = vmul.f32 %v232, %v56
  %v249 = vmul.f32 %v233, %v56
  %v250 = vmul.f32 %v234, %v56
  %v251 = vmul.f32 %v235, %v56
  %v252 = vmul.f32 %v236, %v56
  %v253 = vmul.f32 %v237, %v56
  %v254 = vmul.f32 %v238, %v56
  %v255 = vmul.f32 %v239, %v56
  %v256 = vmul.f32 %v240, %v56
  %v257 = vmul.f32 %v241, %v56
  %v258 = vadd.f32 %v242, %v78
  %v259 = vadd.f32 %v243, %v78
  %v260 = vadd.f32 %v244, %v78
  %v261 = vadd.f32 %v245, %v78
  %v262 = vadd.f32 %v246, %v78
  %v263 = vadd.f32 %v247, %v78
  %v264 = vadd.f32 %v248, %v78
  %v265 = vadd.f32 %v249, %v78
  %v266 = vadd.f32 %v250, %v78
  %v267 = vadd.f32 %v251, %v78
  %v268 = vadd.f32 %v252, %v78
  %v269 = vadd.f32 %v253, %v78
  %v270 = vadd.f32 %v254, %v78
  %v271 = vadd.f32 %v255, %v78
  %v272 = vadd.f32 %v256, %v78
  %v273 = vadd.f32 %v257, %v78
  %v274 = vmax.f32 %v258, 0.0
  %v275 = vmax.f32 %v259, 0.0
  %v276 = vmax.f32 %v260, 0.0
  %v277 = vmax.f32 %v261, 0.0
  %v278 = vmax.f32 %v262, 0.0
  %v279 = vmax.f32 %v263, 0.0
  %v280 = vmax.f32 %v264, 0.0
  %v281 = vmax.f32 %v265, 0.0
  %v282 = vmax.f32 %v266, 0.0
  %v283 = vmax.f32 %v267, 0.0
  %v284 = vmax.f32 %v268, 0.0
  %v285 = vmax.f32 %v269, 0.0
  %v286 = vmax.f32 %v270, 0.0
  %v287 = vmax.f32 %v271, 0.0
  %v288 = vmax.f32 %v272, 0.0
  %v289 = vmax.f32 %v273, 0.0
  %s290 = scalar_lea.vmem %s0, 192
  %v291 = vld [vmem:[%s290] sm:$0xf]
  %v292 = vld [vmem:[%s290 + $0x4] sm:$0xf]
  %v293 = vld [vmem:[%s290 + $0x8] sm:$0xf]
  %v294 = vld [vmem:[%s290 + $0xc] sm:$0xf]
  %v295 = vld [vmem:[%s290 + $0x10] sm:$0xf]
  %v296 = vld [vmem:[%s290 + $0x14] sm:$0xf]
  %v297 = vld [vmem:[%s290 + $0x18] sm:$0xf]
  %v298 = vld [vmem:[%s290 + $0x1c] sm:$0xf]
  %v299 = vld [vmem:[%s290 + $0x20] sm:$0xf]
  %v300 = vld [vmem:[%s290 + $0x24] sm:$0xf]
  %v301 = vld [vmem:[%s290 + $0x28] sm:$0xf]
  %v302 = vld [vmem:[%s290 + $0x2c] sm:$0xf]
  %v303 = vld [vmem:[%s290 + $0x30] sm:$0xf]
  %v304 = vld [vmem:[%s290 + $0x34] sm:$0xf]
  %v305 = vld [vmem:[%s290 + $0x38] sm:$0xf]
  %v306 = vld [vmem:[%s290 + $0x3c] sm:$0xf]
  %v307 = vunpack.c.l.bf16 %v291
  %v308 = vunpack.c.l.bf16 %v292
  %v309 = vunpack.c.l.bf16 %v293
  %v310 = vunpack.c.l.bf16 %v294
  %v311 = vunpack.c.l.bf16 %v295
  %v312 = vunpack.c.l.bf16 %v296
  %v313 = vunpack.c.l.bf16 %v297
  %v314 = vunpack.c.l.bf16 %v298
  %v315 = vunpack.c.l.bf16 %v299
  %v316 = vunpack.c.l.bf16 %v300
  %v317 = vunpack.c.l.bf16 %v301
  %v318 = vunpack.c.l.bf16 %v302
  %v319 = vunpack.c.l.bf16 %v303
  %v320 = vunpack.c.l.bf16 %v304
  %v321 = vunpack.c.l.bf16 %v305
  %v322 = vunpack.c.l.bf16 %v306
  %v323 = vmul.f32 %v307, %v56
  %v324 = vmul.f32 %v308, %v56
  %v325 = vmul.f32 %v309, %v56
  %v326 = vmul.f32 %v310, %v56
  %v327 = vmul.f32 %v311, %v56
  %v328 = vmul.f32 %v312, %v56
  %v329 = vmul.f32 %v313, %v56
  %v330 = vmul.f32 %v314, %v56
  %v331 = vmul.f32 %v315, %v56
  %v332 = vmul.f32 %v316, %v56
  %v333 = vmul.f32 %v317, %v56
  %v334 = vmul.f32 %v318, %v56
  %v335 = vmul.f32 %v319, %v56
  %v336 = vmul.f32 %v320, %v56
  %v337 = vmul.f32 %v321, %v56
  %v338 = vmul.f32 %v322, %v56
  %v339 = vadd.f32 %v323, %v78
  %v340 = vadd.f32 %v324, %v78
  %v341 = vadd.f32 %v325, %v78
  %v342 = vadd.f32 %v326, %v78
  %v343 = vadd.f32 %v327, %v78
  %v344 = vadd.f32 %v328, %v78
  %v345 = vadd.f32 %v329, %v78
  %v346 = vadd.f32 %v330, %v78
  %v347 = vadd.f32 %v331, %v78
  %v348 = vadd.f32 %v332, %v78
  %v349 = vadd.f32 %v333, %v78
  %v350 = vadd.f32 %v334, %v78
  %v351 = vadd.f32 %v335, %v78
  %v352 = vadd.f32 %v336, %v78
  %v353 = vadd.f32 %v337, %v78
  %v354 = vadd.f32 %v338, %v78
  %v355 = vmax.f32 %v339, 0.0
  %v356 = vmax.f32 %v340, 0.0
  %v357 = vmax.f32 %v341, 0.0
  %v358 = vmax.f32 %v342, 0.0
  %v359 = vmax.f32 %v343, 0.0
  %v360 = vmax.f32 %v344, 0.0
  %v361 = vmax.f32 %v345, 0.0
  %v362 = vmax.f32 %v346, 0.0
  %v363 = vmax.f32 %v347, 0.0
  %v364 = vmax.f32 %v348, 0.0
  %v365 = vmax.f32 %v349, 0.0
  %v366 = vmax.f32 %v350, 0.0
  %v367 = vmax.f32 %v351, 0.0
  %v368 = vmax.f32 %v352, 0.0
  %v369 = vmax.f32 %v353, 0.0
  %v370 = vmax.f32 %v354, 0.0
  %v371 = vadd.f32 %v274, %v355
  %v372 = vadd.f32 %v275, %v356
  %v373 = vadd.f32 %v276, %v357
  %v374 = vadd.f32 %v277, %v358
  %v375 = vadd.f32 %v278, %v359
  %v376 = vadd.f32 %v279, %v360
  %v377 = vadd.f32 %v280, %v361
  %v378 = vadd.f32 %v281, %v362
  %v379 = vadd.f32 %v282, %v363
  %v380 = vadd.f32 %v283, %v364
  %v381 = vadd.f32 %v284, %v365
  %v382 = vadd.f32 %v285, %v366
  %v383 = vadd.f32 %v286, %v367
  %v384 = vadd.f32 %v287, %v368
  %v385 = vadd.f32 %v288, %v369
  %v386 = vadd.f32 %v289, %v370
  %v387 = vadd.f32 %v193, %v371
  %v388 = vadd.f32 %v194, %v372
  %v389 = vadd.f32 %v195, %v373
  %v390 = vadd.f32 %v196, %v374
  %v391 = vadd.f32 %v197, %v375
  %v392 = vadd.f32 %v198, %v376
  %v393 = vadd.f32 %v199, %v377
  %v394 = vadd.f32 %v200, %v378
  %v395 = vadd.f32 %v201, %v379
  %v396 = vadd.f32 %v202, %v380
  %v397 = vadd.f32 %v203, %v381
  %v398 = vadd.f32 %v204, %v382
  %v399 = vadd.f32 %v205, %v383
  %v400 = vadd.f32 %v206, %v384
  %v401 = vadd.f32 %v207, %v385
  %v402 = vadd.f32 %v208, %v386
  %v403 = vpack.c.bf16 %v388, %v387
  %v404 = vpack.c.bf16 %v390, %v389
  %v405 = vpack.c.bf16 %v392, %v391
  %v406 = vpack.c.bf16 %v394, %v393
  %v407 = vpack.c.bf16 %v396, %v395
  %v408 = vpack.c.bf16 %v398, %v397
  %v409 = vpack.c.bf16 %v400, %v399
  %v410 = vpack.c.bf16 %v402, %v401
  %v411 = vld [vmem:[%s3] sm:$0xf]
  %v412 = vld [vmem:[%s3 + $0x4] sm:$0xf]
  %v415 = vunpack.c.l.b16 %v411
  %v416 = vunpack.c.l.b16 %v412
  %v417 = vpack.c.b16 %v416, %v415
  %vm419 = vcmask 130048
  %v421 = vsel %vm419, %v403, 0
  %v424 = vsel %vm419, %v404, 0
  %v427 = vsel %vm419, %v405, 0
  %v430 = vsel %vm419, %v406, 0
  %v433 = vsel %vm419, %v407, 0
  %v436 = vsel %vm419, %v408, 0
  %v439 = vsel %vm419, %v409, 0
  %v442 = vsel %vm419, %v410, 0
  %444 = vmatprep.subr.bf16.mxu0 0
  %445 = vmatpush1.bf16.msra.mxu0 %v417
  %446 = vmatprep.subr.bf16.mxu0 0
  %447 = vmatpush1.bf16.msra.mxu0 0
  %448 = vmatprep.subr.bf16.mxu0 0
  %449 = vmatpush1.bf16.msra.mxu0 0
  %450 = vmatprep.subr.bf16.mxu0 0
  %451 = vmatpush1.bf16.msra.mxu0 0
  %452 = vmatprep.subr.bf16.mxu0 0
  %453 = vmatpush1.bf16.msra.mxu0 0
  %454 = vmatprep.subr.bf16.mxu0 0
  %455 = vmatpush1.bf16.msra.mxu0 0
  %456 = vmatprep.subr.bf16.mxu0 0
  %457 = vmatpush1.bf16.msra.mxu0 0
  %458 = vmatprep.subr.bf16.mxu0 0
  %459 = vmatpush1.bf16.msra.mxu0 0
  %460 = vmatprep.subr.bf16.mxu0 0
  %461 = vmatpush1.bf16.msra.mxu0 0
  %462 = vmatprep.subr.bf16.mxu0 0
  %463 = vmatpush1.bf16.msra.mxu0 0
  %464 = vmatprep.subr.bf16.mxu0 0
  %465 = vmatpush1.bf16.msra.mxu0 0
  %466 = vmatprep.subr.bf16.mxu0 0
  %467 = vmatpush1.bf16.msra.mxu0 0
  %468 = vmatprep.subr.bf16.mxu0 0
  %469 = vmatpush1.bf16.msra.mxu0 0
  %470 = vmatprep.subr.bf16.mxu0 0
  %471 = vmatpush1.bf16.msra.mxu0 0
  %472 = vmatprep.subr.bf16.mxu0 0
  %473 = vmatpush1.bf16.msra.mxu0 0
  %474 = vmatprep.subr.bf16.mxu0 0
  %475 = vmatpush1.bf16.msra.mxu0 0
  %476 = vmatprep.mubr.bf16.mxu0 0
  %477 = vmatmul.mubr.bf16.gmra.mrb[0].mxu0 %v421
  %v478 = vpop.f32.mrb[0].mxu0
  %v479 = vadd.f32 0.0, %v478
  %v480 = vpop.f32.mrb[0].mxu0
  %v481 = vpop.f32.mrb[0].mxu0
  %v482 = vadd.f32 0.0, %v481
  %v483 = vpop.f32.mrb[0].mxu0
  %484 = vmatprep.mubr.bf16.mxu0 0
  %485 = vmatmul.mubr.bf16.gmra.mrb[0].mxu0 %v424
  %v486 = vpop.f32.mrb[0].mxu0
  %v487 = vadd.f32 0.0, %v486
  %v488 = vpop.f32.mrb[0].mxu0
  %v489 = vpop.f32.mrb[0].mxu0
  %v490 = vadd.f32 0.0, %v489
  %v491 = vpop.f32.mrb[0].mxu0
  %492 = vmatprep.mubr.bf16.mxu0 0
  %493 = vmatmul.mubr.bf16.gmra.mrb[0].mxu0 %v427
  %v494 = vpop.f32.mrb[0].mxu0
  %v495 = vadd.f32 0.0, %v494
  %v496 = vpop.f32.mrb[0].mxu0
  %v497 = vpop.f32.mrb[0].mxu0
  %v498 = vadd.f32 0.0, %v497
  %v499 = vpop.f32.mrb[0].mxu0
  %500 = vmatprep.mubr.bf16.mxu0 0
  %501 = vmatmul.mubr.bf16.gmra.mrb[0].mxu0 %v430
  %v502 = vpop.f32.mrb[0].mxu0
  %v503 = vadd.f32 0.0, %v502
  %v504 = vpop.f32.mrb[0].mxu0
  %v505 = vpop.f32.mrb[0].mxu0
  %v506 = vadd.f32 0.0, %v505
  %v507 = vpop.f32.mrb[0].mxu0
  %508 = vmatprep.mubr.bf16.mxu0 0
  %509 = vmatmul.mubr.bf16.gmra.mrb[0].mxu0 %v433
  %v510 = vpop.f32.mrb[0].mxu0
  %v511 = vadd.f32 0.0, %v510
  %v512 = vpop.f32.mrb[0].mxu0
  %v513 = vpop.f32.mrb[0].mxu0
  %v514 = vadd.f32 0.0, %v513
  %v515 = vpop.f32.mrb[0].mxu0
  %516 = vmatprep.mubr.bf16.mxu0 0
  %517 = vmatmul.mubr.bf16.gmra.mrb[0].mxu0 %v436
  %v518 = vpop.f32.mrb[0].mxu0
  %v519 = vadd.f32 0.0, %v518
  %v520 = vpop.f32.mrb[0].mxu0
  %v521 = vpop.f32.mrb[0].mxu0
  %v522 = vadd.f32 0.0, %v521
  %v523 = vpop.f32.mrb[0].mxu0
  %524 = vmatprep.mubr.bf16.mxu0 0
  %525 = vmatmul.mubr.bf16.gmra.mrb[0].mxu0 %v439
  %v526 = vpop.f32.mrb[0].mxu0
  %v527 = vadd.f32 0.0, %v526
  %v528 = vpop.f32.mrb[0].mxu0
  %v529 = vpop.f32.mrb[0].mxu0
  %v530 = vadd.f32 0.0, %v529
  %v531 = vpop.f32.mrb[0].mxu0
  %532 = vmatprep.mubr.bf16.mxu0 0
  %533 = vmatmul.mubr.bf16.gmra.mrb[0].mxu0 %v442
  %v534 = vpop.f32.mrb[0].mxu0
  %v535 = vadd.f32 0.0, %v534
  %v536 = vpop.f32.mrb[0].mxu0
  %v537 = vpop.f32.mrb[0].mxu0
  %v538 = vadd.f32 0.0, %v537
  %v539 = vpop.f32.mrb[0].mxu0
  %540 = vdwg.mxu0
  %541 = vst [vmem:[%s4] sm:$0xff] %v479
  %542 = vst [vmem:[%s4 + $0x8] sm:$0xff] %v482
  %543 = vst [vmem:[%s4 + $0x10] sm:$0xff] %v487
  %544 = vst [vmem:[%s4 + $0x18] sm:$0xff] %v490
  %545 = vst [vmem:[%s4 + $0x20] sm:$0xff] %v495
  %546 = vst [vmem:[%s4 + $0x28] sm:$0xff] %v498
  %547 = vst [vmem:[%s4 + $0x30] sm:$0xff] %v503
  %548 = vst [vmem:[%s4 + $0x38] sm:$0xff] %v506
  %549 = vst [vmem:[%s4 + $0x40] sm:$0xff] %v511
  %550 = vst [vmem:[%s4 + $0x48] sm:$0xff] %v514
  %551 = vst [vmem:[%s4 + $0x50] sm:$0xff] %v519
  %552 = vst [vmem:[%s4 + $0x58] sm:$0xff] %v522
  %553 = vst [vmem:[%s4 + $0x60] sm:$0xff] %v527
  %554 = vst [vmem:[%s4 + $0x68] sm:$0xff] %v530
  %555 = vst [vmem:[%s4 + $0x70] sm:$0xff] %v535
  %556 = vst [vmem:[%s4 + $0x78] sm:$0xff] %v538
  // Predicated region
  $region18: #{transition_layer.1} parent=0 // pred_check
    _
  $region19: #{transition_layer.1} parent=0 // pred_check_branch
    %558 = sbr.rel (0) target = $region21
  $region20: #{transition_layer.1} parent=0 // pred_region
    _
  $region21: #{transition_layer.1} parent=0 // pred_fallthru
    _
  // Predicated region
  $region22: #{transition_layer.1} parent=0 // pred_check
    _
  $region23: #{transition_layer.1} parent=0 // pred_check_branch
    %560 = sbr.rel (0) target = $region25
  $region24: #{transition_layer.1} parent=0 // pred_region
    _
  $region25: #{transition_layer.1} parent=0 // pred_fallthru
    _

</llo_original>
